<compile_context>
chip_gen: v5e
topology: v5e:2x2
jax: 0.10.0
libtpu: 0.0.40
codegen_flags: <defaults>
</compile_context>

<pallas_src>
import jax
import jax.numpy as jnp
from jax.experimental import pallas as pl
from jax.experimental.pallas import tpu as pltpu

_LANES = 128
_SUBLANES = 8
_MAX_TILE_ROWS = 8192   # (8192, 128) f32 = 4 MiB per input block
_CHUNK_ROWS = 512       # rows per inner reduction chunk (multiple of 32)


def _cdiv(a, b):
    return -(-a // b)


def _round_up(a, b):
    return _cdiv(a, b) * b


def _make_huber_kernel(tile_rows, chunk_rows, steps_per_shard, valid_rows, need_mask):
    """Builds the kernel with static tiling parameters closed over."""
    n_chunks = tile_rows // chunk_rows
    rem_rows = tile_rows - n_chunks * chunk_rows     # multiple of 8 (both operands are)
    unroll = max(1, min(n_chunks, 4))

    def _huber(p, t):
        # delta = 1.0 hardcoded upstream (F.huber_loss(pred, target, delta=1.0)).
        d = p.astype(jnp.float32) - t.astype(jnp.float32)
        ad = jnp.abs(d)
        m = jnp.minimum(ad, jnp.float32(1.0))        # branch-free Huber
        return m * (ad - jnp.float32(0.5) * m)

    def _fold(e, nrows):
        # Pure-VPU partial reduction: (nrows, 128) -> (8, 128).
        return e.reshape(nrows // _SUBLANES, _SUBLANES, _LANES).sum(axis=0)

    def kernel(pred_ref, tgt_ref, out_ref):
        shard = pl.program_id(0)
        step = pl.program_id(1)

        # Zero this shard's resident (8, 128) accumulator on its first step.
        @pl.when(step == 0)
        def _():
            out_ref[...] = jnp.zeros_like(out_ref)

        block_row0 = (shard * steps_per_shard + step) * tile_rows

        def piece(r0, nrows, masked):
            p = pred_ref[pl.ds(r0, nrows), :]
            t = tgt_ref[pl.ds(r0, nrows), :]
            e = _huber(p, t)
            if masked:
                # Rows past the true row count (ragged/oversized block) read
                # undefined VMEM; select them to exactly 0.
                row = (block_row0 + r0
                       + jax.lax.broadcasted_iota(jnp.int32, (nrows, _LANES), 0))
                e = jnp.where(row < valid_rows, e, jnp.float32(0.0))
            return _fold(e, nrows)

        def accumulate(masked):
            acc = jnp.zeros((_SUBLANES, _LANES), jnp.float32)
            if n_chunks > 0:
                def body(c, a):
                    r0 = pl.multiple_of(c * chunk_rows, chunk_rows)
                    return a + piece(r0, chunk_rows, masked)
                acc = jax.lax.fori_loop(0, n_chunks, body, acc, unroll=unroll)
            if rem_rows > 0:
                acc = acc + piece(n_chunks * chunk_rows, rem_rows, masked)
            out_ref[...] += acc

        if need_mask:
            # Only the ragged tail block pays the mask cost; all fully
            # in-bounds blocks take the plain path.
            is_ragged = block_row0 + tile_rows > valid_rows

            @pl.when(is_ragged)
            def _():
                accumulate(masked=True)

            @pl.when(jnp.logical_not(is_ragged))
            def _():
                accumulate(masked=False)
        else:
            accumulate(masked=False)

    return kernel


def huber_loss_pallas(pred, target, loss_weight=1.0, reduction="mean", delta=1.0):
    """Matches HuberLoss.forward(pred, target) with weight=None.

    The inner F.huber_loss already reduces to a scalar mean, so the outer
    reduction mode does not change the result; it is validated only.
    `delta` is accepted but ignored (delta=1.0 hardcoded), mirroring the
    upstream @weighted_loss wrapper.
    """
    # TODO(synk): elementwise `weight` tensor path of @weighted_loss is not implemented.
    if reduction not in ("none", "mean", "sum"):
        raise ValueError(f"Unsupported reduction mode: {reduction}")
    assert pred.shape == target.shape
    n_elems = pred.size
    assert n_elems > 0

    # Flatten NCHW (free reshape). Pad ONLY when n_elems % 128 != 0 — this pad
    # materializes a full copy of both tensors through HBM, so it is restricted
    # to the rare non-lane-aligned case. Zero padding contributes huber(0,0)=0.
    flat_p = jnp.ravel(pred)
    flat_t = jnp.ravel(target)
    padded = _round_up(n_elems, _LANES)
    if padded != n_elems:
        flat_p = jnp.pad(flat_p, (0, padded - n_elems))
        flat_t = jnp.pad(flat_t, (0, padded - n_elems))

    rows = padded // _LANES

    # Sublane alignment of the block: 8 rows for 4-byte dtypes, 16 for 2-byte
    # (bf16), 32 for 1-byte, so packed-sublane layouts are respected.
    itemsize = max(1, pred.dtype.itemsize)
    row_align = _SUBLANES * max(1, 4 // itemsize)

    # Biggest block that fits the VMEM budget; oversized/ragged last block is
    # masked inside the kernel (no extra host-side padding of rows).
    tile_rows = min(_MAX_TILE_ROWS, _round_up(rows, row_align))
    total_steps = _cdiv(rows, tile_rows)
    need_mask = total_steps * tile_rows != rows

    # 2 shards only when the step count splits evenly: no clamped duplicate
    # blocks, no forced masking. On 1-TC chips the parallel axis is a cheap
    # serial loop; on v7x it spreads HBM streaming over both TensorCores.
    n_shards = 2 if (total_steps >= 2 and total_steps % 2 == 0) else 1
    steps_per_shard = total_steps // n_shards

    p2 = flat_p.reshape(rows, _LANES)
    t2 = flat_t.reshape(rows, _LANES)

    def in_map(c, i):
        return (c * steps_per_shard + i, 0)

    kernel = _make_huber_kernel(tile_rows, _CHUNK_ROWS, steps_per_shard, rows, need_mask)

    partials = pl.pallas_call(
        kernel,
        out_shape=jax.ShapeDtypeStruct((n_shards * _SUBLANES, _LANES), jnp.float32),
        grid_spec=pltpu.PrefetchScalarGridSpec(
            num_scalar_prefetch=0,
            grid=(n_shards, steps_per_shard),
            in_specs=[
                pl.BlockSpec((tile_rows, _LANES), in_map),
                pl.BlockSpec((tile_rows, _LANES), in_map),
            ],
            out_specs=pl.BlockSpec((_SUBLANES, _LANES), lambda c, i: (c, 0)),
        ),
        compiler_params=pltpu.CompilerParams(
            dimension_semantics=("parallel", "arbitrary"),
            # 2 inputs x 2 buffers x 4 MiB = 16 MiB: exceeds v5e's 16 MiB
            # scoped default, so raise it explicitly (fits v7x 64 MiB physical).
            vmem_limit_bytes=32 * 1024 * 1024),
    )(p2, t2)

    # Single cross-lane/cross-shard reduce, once, in JAX.
    total = jnp.sum(partials)
    mean_loss = total / jnp.float32(n_elems)
    return jnp.float32(loss_weight) * mean_loss


def _reference(pred, target, loss_weight=1.0):
    d = pred.astype(jnp.float32) - target.astype(jnp.float32)
    ad = jnp.abs(d)
    elem = jnp.where(ad < 1.0, 0.5 * d * d, 1.0 * (ad - 0.5))
    return jnp.float32(loss_weight) * jnp.mean(elem)


if __name__ == "__main__":
    key = jax.random.PRNGKey(0)
    k1, k2 = jax.random.split(key)
    N, C, H, W = 2, 4, 16, 16  # NCHW, like the PyTorch module
    pred = jax.random.normal(k1, (N, C, H, W), dtype=jnp.float32) * 2.0
    target = jax.random.normal(k2, (N, C, H, W), dtype=jnp.float32)

    out = huber_loss_pallas(pred, target, loss_weight=1.0, reduction="mean")
    out = jax.block_until_ready(out)

    ref = _reference(pred, target, loss_weight=1.0)
    assert jnp.allclose(out, ref, rtol=1e-5, atol=1e-6), (out, ref)
    print("KERNEL_OK")
</pallas_src>

<mosaic_0001>
module attributes {stable_mosaic.version = 11 : i64} {
  func.func @kernel(%arg0: i32, %arg1: i32, %arg2: memref<16x128xf32, #tpu.memory_space<vmem>>, %arg3: memref<16x128xf32, #tpu.memory_space<vmem>>, %arg4: memref<8x128xf32, #tpu.memory_space<vmem>>) attributes {dimension_semantics = [#tpu.dimension_semantics<parallel>, #tpu.dimension_semantics<arbitrary>], iteration_bounds = array<i64: 1, 1>, scalar_prefetch = 0 : i64, scratch_operands = 0 : i64, tpu.core_type = #tpu.core_type<tc>, window_params = [{transform_indices = @transform_0, window_bounds = array<i64: 16, 128>}, {transform_indices = @transform_1, window_bounds = array<i64: 16, 128>}, {transform_indices = @transform_2, window_bounds = array<i64: 8, 128>}]} {
    %c0_i32 = arith.constant 0 : i32
    %0 = arith.cmpi eq, %arg1, %c0_i32 : i32
    %1 = arith.extui %0 : i1 to i32
    %c0_i32_0 = arith.constant 0 : i32
    %2 = arith.cmpi ne, %1, %c0_i32_0 : i32
    scf.if %2 {
      %cst_11 = arith.constant 0.000000e+00 : f32
      %20 = vector.broadcast %cst_11 : f32 to vector<8x128xf32>
      %c0_12 = arith.constant 0 : index
      %c0_13 = arith.constant 0 : index
      %21 = vector.load %arg4[%c0_12, %c0_13] : memref<8x128xf32, #tpu.memory_space<vmem>>, vector<8x128xf32>
      tpu.vector_store %arg4[%c0_12, %c0_13], %20 {strides = array<i32>} : memref<8x128xf32, #tpu.memory_space<vmem>>, vector<8x128xf32>,
    } else {
    }
    %cst = arith.constant 0.000000e+00 : f32
    %3 = vector.broadcast %cst : f32 to vector<8x128xf32>
    %c0 = arith.constant 0 : index
    %c0_1 = arith.constant 0 : index
    %4 = vector.load %arg2[%c0, %c0_1] : memref<16x128xf32, #tpu.memory_space<vmem>>, vector<16x128xf32>
    %c0_2 = arith.constant 0 : index
    %c0_3 = arith.constant 0 : index
    %5 = vector.load %arg3[%c0_2, %c0_3] : memref<16x128xf32, #tpu.memory_space<vmem>>, vector<16x128xf32>
    %6 = arith.subf %4, %5 : vector<16x128xf32>
    %7 = math.absf %6 : vector<16x128xf32>
    %cst_4 = arith.constant 1.000000e+00 : f32
    %8 = vector.broadcast %cst_4 : f32 to vector<16x128xf32>
    %9 = arith.minimumf %7, %8 : vector<16x128xf32>
    %cst_5 = arith.constant 5.000000e-01 : f32
    %10 = vector.broadcast %cst_5 : f32 to vector<16x128xf32>
    %11 = arith.mulf %10, %9 : vector<16x128xf32>
    %12 = arith.subf %7, %11 : vector<16x128xf32>
    %13 = arith.mulf %9, %12 : vector<16x128xf32>
    %14 = vector.shape_cast %13 : vector<16x128xf32> to vector<2x8x128xf32>
    %cst_6 = arith.constant dense<0.000000e+00> : vector<8x128xf32>
    %15 = vector.multi_reduction <add>, %14, %cst_6 [0] : vector<2x8x128xf32> to vector<8x128xf32>
    %16 = arith.addf %3, %15 : vector<8x128xf32>
    %c0_7 = arith.constant 0 : index
    %c0_8 = arith.constant 0 : index
    %17 = vector.load %arg4[%c0_7, %c0_8] : memref<8x128xf32, #tpu.memory_space<vmem>>, vector<8x128xf32>
    %18 = arith.addf %17, %16 : vector<8x128xf32>
    %c0_9 = arith.constant 0 : index
    %c0_10 = arith.constant 0 : index
    %19 = vector.load %arg4[%c0_9, %c0_10] : memref<8x128xf32, #tpu.memory_space<vmem>>, vector<8x128xf32>
    tpu.vector_store %arg4[%c0_9, %c0_10], %18 {strides = array<i32>} : memref<8x128xf32, #tpu.memory_space<vmem>>, vector<8x128xf32>,
    return
  }
  func.func @transform_0(%arg0: i32, %arg1: i32) -> (i32, i32) {
    %c1_i32 = arith.constant 1 : i32
    %0 = arith.muli %arg0, %c1_i32 : i32
    %1 = arith.addi %0, %arg1 : i32
    %c0_i32 = arith.constant 0 : i32
    %c0_i32_0 = arith.constant 0 : i32
    return %1, %c0_i32 : i32, i32
  }
  func.func @transform_1(%arg0: i32, %arg1: i32) -> (i32, i32) {
    %c1_i32 = arith.constant 1 : i32
    %0 = arith.muli %arg0, %c1_i32 : i32
    %1 = arith.addi %0, %arg1 : i32
    %c0_i32 = arith.constant 0 : i32
    %c0_i32_0 = arith.constant 0 : i32
    return %1, %c0_i32 : i32, i32
  }
  func.func @transform_2(%arg0: i32, %arg1: i32) -> (i32, i32) {
    %c0_i32 = arith.constant 0 : i32
    %c0_i32_0 = arith.constant 0 : i32
    return %arg0, %c0_i32 : i32, i32
  }
}

</mosaic_0001>

<llo_original>
// kernel: tpu_custom_call.1
$region0: #{tpu_custom_call.1}
  #allocation0 [shape = 'u32[]', space=smem, size = 0x4, offset = 0x4, fixed_abs, tag = 'smem constant byte address 0x4 - core index']
  #allocation1 [shape = 'u32[72,128]{1,0:T(1,128)}', space=vmem, size = 0x9000, scoped, tag = 'internal scratch']
  %s0 = inlined_call_operand.hbm [shape: f32[16,128], index: 0, kind: input, shape index: {}]
  %s1 = inlined_call_operand.hbm [shape: f32[16,128], index: 1, kind: input, shape index: {}]
  %s2 = inlined_call_operand.hbm [shape: f32[8,128], index: 2, kind: output, shape index: {}]
  %s3 = sld [smem:[#allocation0]]
  $region30: #{tpu_custom_call.1} parent=0
    _
  %s5 = ssub.s32 1, %s3
  %s6 = scalar_select 0, %s5, %s3
  $region1: #{tpu_custom_call.1} parent=0
    #allocation2 [shape = 'u8[8192]{0}', space=vmem, size = 0x2000, scoped, tag = 'input window, operand 0, single buffered']
    #allocation3 [shape = 's32[1]{0}', space=sflag, size = 0x4, scoped, tag = 'scoped memory for tpu_custom_call.1']
    #allocation4 [shape = 's32[1]{0}', space=sflag, size = 0x4, scoped, tag = 'scoped memory for tpu_custom_call.1']
    #allocation5 [shape = 'u8[8192]{0}', space=vmem, size = 0x2000, scoped, tag = 'input window, operand 1, single buffered']
    #allocation6 [shape = 's32[1]{0}', space=sflag, size = 0x4, scoped, tag = 'scoped memory for tpu_custom_call.1']
    #allocation7 [shape = 'u8[4096]{0}', space=vmem, size = 0x1000, scoped, tag = 'output window, operand 0, single buffered']
    %7 = vsyncpa [#allocation3], 0
    %8 = vsyncpa [#allocation6], 0
    %9 = vsyncpa [#allocation4], 0
    // Predicated region
    $region2: #{tpu_custom_call.1} parent=1 // pred_check
      _
    $region3: #{tpu_custom_call.1} parent=1 // pred_check_branch
      %11 = sbr.rel (0) target = $region5
    $region4: #{tpu_custom_call.1} parent=1 // pred_region
      %s12 = sadd.s32 0, 0
      %s13 = smul.u32 2, %s12
      %15 = vsyncadd [#allocation3], 0
      %s16 = smul.addr %s13, 8
      %s17 = scalar_lea.hbm %s0, %s16
      %s18 = sshll.u32 %s17, 4
      %s19 = int_to_ptr.hbm [resolvable:$true] %s18
      %s20 = sshll.u32 [#allocation2], 4
      %s21 = int_to_ptr.vmem [resolvable:$true] %s20
      %26 = dma.hbm_to_vmem [thread:$0]  %s19, 256, %s21, [#allocation3], 128, 128, 8
    $region5: #{tpu_custom_call.1} parent=1 // pred_fallthru
      _
    // Predicated region
    $region6: #{tpu_custom_call.1} parent=1 // pred_check
      _
    $region7: #{tpu_custom_call.1} parent=1 // pred_check_branch
      %28 = sbr.rel (0) target = $region9
    $region8: #{tpu_custom_call.1} parent=1 // pred_region
      %s29 = sadd.s32 0, 0
      %s30 = smul.u32 2, %s29
      %32 = vsyncadd [#allocation6], 0
      %s33 = smul.addr %s30, 8
      %s34 = scalar_lea.hbm %s1, %s33
      %s35 = sshll.u32 %s34, 4
      %s36 = int_to_ptr.hbm [resolvable:$true] %s35
      %s37 = sshll.u32 [#allocation5], 4
      %s38 = int_to_ptr.vmem [resolvable:$true] %s37
      %43 = dma.hbm_to_vmem [thread:$0]  %s36, 256, %s38, [#allocation6], 128, 128, 8
    $region9: #{tpu_custom_call.1} parent=1 // pred_fallthru
      _
    // Predicated region
    $region10: #{tpu_custom_call.1} parent=1 // pred_check
      _
    $region11: #{tpu_custom_call.1} parent=1 // pred_check_branch
      %45 = sbr.rel (0) target = $region13
    $region12: #{tpu_custom_call.1} parent=1 // pred_region
      %47 = dma.done [#allocation3], 256
    $region13: #{tpu_custom_call.1} parent=1 // pred_fallthru
      _
    // Predicated region
    $region14: #{tpu_custom_call.1} parent=1 // pred_check
      _
    $region15: #{tpu_custom_call.1} parent=1 // pred_check_branch
      %49 = sbr.rel (0) target = $region17
    $region16: #{tpu_custom_call.1} parent=1 // pred_region
      %51 = dma.done [#allocation6], 256
    $region17: #{tpu_custom_call.1} parent=1 // pred_fallthru
      _
    %s52 = sadd.s32 0, 0
    %s53 = smul.u32 2, %s52
    %s54 = sadd.s32 0, 0
    %s55 = smul.u32 2, %s54
    %p56 = scmp.eq.s32.totalorder 0, 0
    // Predicated region
    $region18: #{tpu_custom_call.1} parent=1 // pred_check
      %p57 = pneg %p56
    $region19: #{tpu_custom_call.1} parent=1 // pred_check_branch
      %59 = sbr.rel (%p57) target = $region21
    $region20: #{tpu_custom_call.1} parent=1 // pred_region
      %60 = vst [vmem:[#allocation7] sm:$0xff] 0.0
    $region21: #{tpu_custom_call.1} parent=1 // pred_fallthru
      _
    %v61 = vld [vmem:[#allocation2] sm:$0xff]
    %v62 = vld [vmem:[#allocation2 + $0x8] sm:$0xff]
    %v63 = vld [vmem:[#allocation5] sm:$0xff]
    %v64 = vld [vmem:[#allocation5 + $0x8] sm:$0xff]
    %v65 = vsub.f32 %v61, %v63
    %v66 = vsub.f32 %v62, %v64
    %v67 = vand.u32 2147483647, %v65
    %v68 = vand.u32 2147483647, %v66
    %v69 = vmin.f32 %v67, 1.0
    %v70 = vmin.f32 %v68, 1.0
    %v71 = vmul.f32 %v69, 0.5
    %v72 = vmul.f32 %v70, 0.5
    %v73 = vsub.f32 %v67, %v71
    %v74 = vsub.f32 %v68, %v72
    %v75 = vmul.f32 %v69, %v73
    %v76 = vmul.f32 %v70, %v74
    %v77 = vadd.f32 %v75, %v76
    %v78 = vadd.f32 %v77, 0.0
    %v79 = vld [vmem:[#allocation7] sm:$0xff]
    %v80 = vadd.f32 %v79, %v78
    %81 = vst [vmem:[#allocation7] sm:$0xff] %v80
    // Predicated region
    $region22: #{tpu_custom_call.1} parent=1 // pred_check
      _
    $region23: #{tpu_custom_call.1} parent=1 // pred_check_branch
      %83 = sbr.rel (0) target = $region25
    $region24: #{tpu_custom_call.1} parent=1 // pred_region
      %85 = vsyncadd [#allocation4], 0
      %s87 = sshll.u32 [#allocation7], 4
      %s88 = int_to_ptr.vmem [resolvable:$true] %s87
      %s89 = sshll.u32 %s2, 4
      %s90 = int_to_ptr.hbm [resolvable:$true] %s89
      %92 = dma.vmem_to_hbm [thread:$0]  %s88, 128, %s90, [#allocation4]
    $region25: #{tpu_custom_call.1} parent=1 // pred_fallthru
      _
    // Predicated region
    $region26: #{tpu_custom_call.1} parent=1 // pred_check
      _
    $region27: #{tpu_custom_call.1} parent=1 // pred_check_branch
      %94 = sbr.rel (0) target = $region29
    $region28: #{tpu_custom_call.1} parent=1 // pred_region
      %96 = dma.done [#allocation4], 128
    $region29: #{tpu_custom_call.1} parent=1 // pred_fallthru
      _
    %97 = vsyncpa [#allocation3], 1
    %98 = vsyncpa [#allocation6], 1
    %99 = vsyncpa [#allocation4], 1

</llo_original>
